<compile_context>
chip_gen: v7x
topology: tpu7x:2x2x1
jax: 0.10.0
libtpu: 0.0.40
codegen_flags: <defaults>
</compile_context>

<pallas_src>
import functools

import jax
import jax.numpy as jnp
from jax.experimental import pallas as pl
from jax.experimental.pallas import tpu as pltpu

LANE = 128
_VMEM_LIMIT = 32 * 1024 * 1024        # safe on v5e/v6e (128 MiB) and v7x (64 MiB)
_RESIDENT_BYTES = 8 * 1024 * 1024     # keep `support` VMEM-resident below this
_SMALL_FUSED_BYTES = 4 * 1024 * 1024  # single fused kernel if operands fit


def _round_up(v, m):
    return ((v + m - 1) // m) * m


def _pad2(a, rows, cols, dtype):
    r, c = a.shape
    return jnp.pad(a, ((0, rows - r), (0, cols - c))).astype(dtype)


def _masked_log_softmax(z, valid_cols):
    """log_softmax over axis 1, ignoring padded class columns >= valid_cols."""
    col = jax.lax.broadcasted_iota(jnp.int32, z.shape, 1)
    z = jnp.where(col < valid_cols, z, -1e30)
    m = jnp.max(z, axis=1, keepdims=True)
    zs = z - m
    lse = jnp.log(jnp.sum(jnp.exp(zs), axis=1, keepdims=True))
    return zs - lse


# ---------------------------------------------------------------------------
# Path A: small graph -> whole forward in a single pallas_call (all resident).
# ---------------------------------------------------------------------------
def _fused_small_kernel(x_ref, adj_ref, w1_ref, b1_ref, w2_ref, b2_ref, o_ref,
                        *, scale, valid_cols):
    s1 = jnp.dot(x_ref[...], w1_ref[...], preferred_element_type=jnp.float32)
    z1 = jnp.dot(adj_ref[...], s1.astype(jnp.bfloat16),
                 preferred_element_type=jnp.float32) + b1_ref[...]
    h = jnp.where(z1 >= 0.0, z1, scale * z1)        # leaky_relu
    # TODO(synk): F.dropout(training=True) not applied; eval-mode identity.
    s2 = jnp.dot(h.astype(jnp.bfloat16), w2_ref[...],
                 preferred_element_type=jnp.float32)
    z2 = jnp.dot(adj_ref[...], s2.astype(jnp.bfloat16),
                 preferred_element_type=jnp.float32) + b2_ref[...]
    o_ref[...] = _masked_log_softmax(z2, valid_cols).astype(o_ref.dtype)


def _gcn_fused_small(xp, adjp, w1p, b1p, w2p, b2p, *, scale, nclass):
    Np = adjp.shape[0]
    Cp = w2p.shape[1]
    kernel = functools.partial(_fused_small_kernel, scale=scale,
                               valid_cols=nclass)
    return pl.pallas_call(
        kernel,
        out_shape=jax.ShapeDtypeStruct((Np, Cp), jnp.float32),
        compiler_params=pltpu.CompilerParams(vmem_limit_bytes=_VMEM_LIMIT),
    )(xp, adjp, w1p, b1p, w2p, b2p)


# ---------------------------------------------------------------------------
# Path B kernel 1: support1 = x @ W1  (W1 resident, no K grid axis).
# ---------------------------------------------------------------------------
def _feat_transform_kernel(x_ref, w_ref, o_ref):
    o_ref[...] = jnp.dot(x_ref[...], w_ref[...],
                         preferred_element_type=jnp.float32).astype(o_ref.dtype)


def _feature_transform(x, w, *, tm):
    Mp, Fp = x.shape
    Hp = w.shape[1]
    return pl.pallas_call(
        _feat_transform_kernel,
        out_shape=jax.ShapeDtypeStruct((Mp, Hp), jnp.bfloat16),
        grid_spec=pltpu.PrefetchScalarGridSpec(
            num_scalar_prefetch=0,
            grid=(Mp // tm,),
            in_specs=[
                pl.BlockSpec((tm, Fp), lambda i: (i, 0)),     # x row tile
                pl.BlockSpec((Fp, Hp), lambda i: (0, 0)),     # W1 resident
            ],
            out_specs=pl.BlockSpec((tm, Hp), lambda i: (i, 0)),
        ),
        compiler_params=pltpu.CompilerParams(
            dimension_semantics=("parallel",),
            vmem_limit_bytes=_VMEM_LIMIT,
        ),
    )(x, w)


# ---------------------------------------------------------------------------
# Path B kernel 2: support2 = leaky_relu(adj @ support1 + b1) @ W2
#   adj streamed in (tm, tk) tiles; support1, b1, W2 VMEM-resident; the
#   layer-2 feature transform is fused into the k==last finalize.
# ---------------------------------------------------------------------------
def _agg_fused_kernel(adj_ref, s_ref, b_ref, w2_ref, o_ref, acc_ref, *,
                      scale, tk, support_resident):
    k = pl.program_id(1)

    @pl.when(k == 0)
    def _():
        acc_ref[...] = jnp.zeros_like(acc_ref)

    if support_resident:
        start = pl.multiple_of(k * tk, tk)
        s_blk = s_ref[pl.ds(start, tk), :]
    else:
        s_blk = s_ref[...]
    acc_ref[...] += jnp.dot(adj_ref[...], s_blk,
                            preferred_element_type=jnp.float32)

    @pl.when(k == pl.num_programs(1) - 1)
    def _():
        z = acc_ref[...] + b_ref[...]                 # f32 epilogue
        h = jnp.where(z >= 0.0, z, scale * z)         # leaky_relu
        # TODO(synk): dropout identity (eval mode).
        o_ref[...] = jnp.dot(h.astype(jnp.bfloat16), w2_ref[...],
                             preferred_element_type=jnp.float32
                             ).astype(o_ref.dtype)


def _aggregate_fused(adj, support, bias, w2, *, tm, tk, scale,
                     support_resident):
    Np = adj.shape[0]
    Hp = support.shape[1]
    Cp = w2.shape[1]
    if support_resident:
        s_spec = pl.BlockSpec((Np, Hp), lambda i, k: (0, 0))   # resident
    else:
        s_spec = pl.BlockSpec((tk, Hp), lambda i, k: (k, 0))   # streamed
    kernel = functools.partial(_agg_fused_kernel, scale=scale, tk=tk,
                               support_resident=support_resident)
    return pl.pallas_call(
        kernel,
        out_shape=jax.ShapeDtypeStruct((Np, Cp), jnp.bfloat16),
        grid_spec=pltpu.PrefetchScalarGridSpec(
            num_scalar_prefetch=0,
            grid=(Np // tm, Np // tk),
            in_specs=[
                pl.BlockSpec((tm, tk), lambda i, k: (i, k)),   # adj stream
                s_spec,                                        # support1
                pl.BlockSpec((1, Hp), lambda i, k: (0, 0)),    # b1 resident
                pl.BlockSpec((Hp, Cp), lambda i, k: (0, 0)),   # W2 resident
            ],
            out_specs=pl.BlockSpec((tm, Cp), lambda i, k: (i, 0)),
            scratch_shapes=[pltpu.VMEM((tm, Hp), jnp.float32)],
        ),
        compiler_params=pltpu.CompilerParams(
            dimension_semantics=("parallel", "arbitrary"),
            vmem_limit_bytes=_VMEM_LIMIT,
        ),
    )(adj, support, bias, w2)


# ---------------------------------------------------------------------------
# Path B kernel 3: out = log_softmax(adj @ support2 + b2), padded classes masked.
# ---------------------------------------------------------------------------
def _agg_softmax_kernel(adj_ref, s_ref, b_ref, o_ref, acc_ref, *,
                        tk, support_resident, valid_cols):
    k = pl.program_id(1)

    @pl.when(k == 0)
    def _():
        acc_ref[...] = jnp.zeros_like(acc_ref)

    if support_resident:
        start = pl.multiple_of(k * tk, tk)
        s_blk = s_ref[pl.ds(start, tk), :]
    else:
        s_blk = s_ref[...]
    acc_ref[...] += jnp.dot(adj_ref[...], s_blk,
                            preferred_element_type=jnp.float32)

    @pl.when(k == pl.num_programs(1) - 1)
    def _():
        z = acc_ref[...] + b_ref[...]
        o_ref[...] = _masked_log_softmax(z, valid_cols).astype(o_ref.dtype)


def _aggregate_softmax(adj, support, bias, *, tm, tk, support_resident,
                       valid_cols):
    Np = adj.shape[0]
    Cp = support.shape[1]
    if support_resident:
        s_spec = pl.BlockSpec((Np, Cp), lambda i, k: (0, 0))
    else:
        s_spec = pl.BlockSpec((tk, Cp), lambda i, k: (k, 0))
    kernel = functools.partial(_agg_softmax_kernel, tk=tk,
                               support_resident=support_resident,
                               valid_cols=valid_cols)
    return pl.pallas_call(
        kernel,
        out_shape=jax.ShapeDtypeStruct((Np, Cp), jnp.float32),
        grid_spec=pltpu.PrefetchScalarGridSpec(
            num_scalar_prefetch=0,
            grid=(Np // tm, Np // tk),
            in_specs=[
                pl.BlockSpec((tm, tk), lambda i, k: (i, k)),   # adj stream
                s_spec,                                        # support2
                pl.BlockSpec((1, Cp), lambda i, k: (0, 0)),    # b2 resident
            ],
            out_specs=pl.BlockSpec((tm, Cp), lambda i, k: (i, 0)),
            scratch_shapes=[pltpu.VMEM((tm, Cp), jnp.float32)],
        ),
        compiler_params=pltpu.CompilerParams(
            dimension_semantics=("parallel", "arbitrary"),
            vmem_limit_bytes=_VMEM_LIMIT,
        ),
    )(adj, support, bias)


# ---------------------------------------------------------------------------
# Full GCN forward (eval mode)
# ---------------------------------------------------------------------------
def _pick_tile(n):
    """Largest tile in {512,256,128} whose padding overhead stays <= ~25%."""
    lane_np = _round_up(n, LANE)
    limit = int(1.25 * lane_np)
    for t in (512, 256, 128):
        if _round_up(n, t) <= limit:
            return t
    return LANE


def gcn_forward(x, adj, w1, b1, w2, b2, *, scale):
    N, F = x.shape
    H = w1.shape[1]
    C = w2.shape[1]
    assert adj.shape == (N, N)
    b1 = jnp.asarray(b1).reshape(1, H)
    b2 = jnp.asarray(b2).reshape(1, C)

    Fp = _round_up(F, LANE)
    Hp = _round_up(H, LANE)
    Cp = _round_up(C, LANE)
    lane_np = _round_up(N, LANE)

    small = (lane_np <= 512 and
             2 * (lane_np * lane_np + lane_np * Fp) <= _SMALL_FUSED_BYTES)

    if small:
        # Single fused pallas_call: everything resident in VMEM.
        Np = lane_np
        xp = _pad2(x, Np, Fp, jnp.bfloat16)
        adjp = _pad2(adj, Np, Np, jnp.bfloat16)
        w1p = _pad2(w1, Fp, Hp, jnp.bfloat16)
        w2p = _pad2(w2, Hp, Cp, jnp.bfloat16)
        b1p = _pad2(b1, 1, Hp, jnp.float32)
        b2p = _pad2(b2, 1, Cp, jnp.float32)
        out = _gcn_fused_small(xp, adjp, w1p, b1p, w2p, b2p,
                               scale=scale, nclass=C)
        return out[:N, :C]

    # Tiled path.
    tile = _pick_tile(N)
    Np = _round_up(N, tile)
    xp = _pad2(x, Np, Fp, jnp.bfloat16)
    adjp = _pad2(adj, Np, Np, jnp.bfloat16)
    w1p = _pad2(w1, Fp, Hp, jnp.bfloat16)
    w2p = _pad2(w2, Hp, Cp, jnp.bfloat16)
    b1p = _pad2(b1, 1, Hp, jnp.float32)
    b2p = _pad2(b2, 1, Cp, jnp.float32)

    # support1 = x @ W1   (W1 resident; shrink the row tile only if x tile is huge)
    tm_mm = tile if (tile * Fp * 2 * 2 + Fp * Hp * 2) <= _VMEM_LIMIT // 2 else LANE
    support1 = _feature_transform(xp, w1p, tm=tm_mm)

    # support2 = leaky_relu(adj @ support1 + b1) @ W2   (layer-2 transform fused)
    s1_resident = Np * Hp * 2 <= _RESIDENT_BYTES
    support2 = _aggregate_fused(adjp, support1, b1p, w2p, tm=tile, tk=tile,
                                scale=scale, support_resident=s1_resident)

    # out = log_softmax(adj @ support2 + b2)
    s2_resident = Np * Cp * 2 <= _RESIDENT_BYTES
    out = _aggregate_softmax(adjp, support2, b2p, tm=tile, tk=tile,
                             support_resident=s2_resident, valid_cols=C)
    return out[:N, :C]


def _reference(x, adj, w1, b1, w2, b2, scale):
    h = adj @ (x @ w1) + b1.reshape(1, -1)
    h = jnp.where(h >= 0.0, h, scale * h)
    z = adj @ (h @ w2) + b2.reshape(1, -1)
    return jax.nn.log_softmax(z, axis=1)


def _make_case(key, n, nfeat, nhid, nclass, p_edge):
    kx, ka, kw1, kb1, kw2, kb2 = jax.random.split(key, 6)
    x = 3.0 * jax.random.normal(kx, (n, nfeat), dtype=jnp.float32)

    # Deterministic symmetric row-normalized adjacency with self-loops.
    a_raw = (jax.random.uniform(ka, (n, n)) < p_edge).astype(jnp.float32)
    a_sym = jnp.clip(a_raw + a_raw.T, 0.0, 1.0) + jnp.eye(n, dtype=jnp.float32)
    deg = jnp.sum(a_sym, axis=1, keepdims=True)
    adj = a_sym / deg

    bound1 = 1.0 / jnp.sqrt(jnp.float32(nfeat))
    w1 = jax.random.uniform(kw1, (nfeat, nhid), minval=-bound1, maxval=bound1,
                            dtype=jnp.float32)
    b1 = jax.random.uniform(kb1, (1, nhid), minval=-bound1, maxval=bound1,
                            dtype=jnp.float32)
    bound2 = 1.0 / jnp.sqrt(jnp.float32(nhid))
    w2 = jax.random.uniform(kw2, (nhid, nclass), minval=-bound2, maxval=bound2,
                            dtype=jnp.float32)
    b2 = jax.random.uniform(kb2, (1, nclass), minval=-bound2, maxval=bound2,
                            dtype=jnp.float32)
    return x, adj, w1, b1, w2, b2


if __name__ == "__main__":
    scale = 0.2   # leaky_relu negative_slope; dropout=0.5 is identity in eval.
    key = jax.random.PRNGKey(0)
    k_small, k_big = jax.random.split(key, 2)

    # Case 1: small graph -> single fused pallas_call path (N=16 -> Np=128).
    x, adj, w1, b1, w2, b2 = _make_case(k_small, 16, 32, 32, 8, 0.2)
    out = jax.block_until_ready(gcn_forward(x, adj, w1, b1, w2, b2, scale=scale))
    ref = _reference(x, adj, w1, b1, w2, b2, scale)
    assert out.shape == (16, 8)
    # bf16 matmul operands (f32 accumulation) -> loosened tolerance vs f32 ref.
    assert jnp.allclose(out, ref, atol=5e-2, rtol=5e-2), "small-case mismatch"

    # Case 2: larger graph -> tiled path (512 tiles, resident support, fused W2).
    x, adj, w1, b1, w2, b2 = _make_case(k_big, 1000, 200, 96, 12, 0.05)
    out = jax.block_until_ready(gcn_forward(x, adj, w1, b1, w2, b2, scale=scale))
    ref = _reference(x, adj, w1, b1, w2, b2, scale)
    assert out.shape == (1000, 12)
    assert jnp.allclose(out, ref, atol=5e-2, rtol=5e-2), "tiled-case mismatch"

    print("KERNEL_OK")
</pallas_src>

<mosaic_0001>
module attributes {stable_mosaic.version = 11 : i64} {
  func.func @_fused_small_kernel(%arg0: memref<128x128xbf16, #tpu.memory_space<vmem>>, %arg1: memref<128x128xbf16, #tpu.memory_space<vmem>>, %arg2: memref<128x128xbf16, #tpu.memory_space<vmem>>, %arg3: memref<1x128xf32, #tpu.memory_space<vmem>>, %arg4: memref<128x128xbf16, #tpu.memory_space<vmem>>, %arg5: memref<1x128xf32, #tpu.memory_space<vmem>>, %arg6: memref<128x128xf32, #tpu.memory_space<vmem>>) attributes {dimension_semantics = [], scalar_prefetch = 0 : i64, scratch_operands = 0 : i64, tpu.core_type = #tpu.core_type<tc>} {
    %c0 = arith.constant 0 : index
    %c0_0 = arith.constant 0 : index
    %0 = vector.load %arg0[%c0, %c0_0] : memref<128x128xbf16, #tpu.memory_space<vmem>>, vector<128x128xbf16>
    %c0_1 = arith.constant 0 : index
    %c0_2 = arith.constant 0 : index
    %1 = vector.load %arg2[%c0_1, %c0_2] : memref<128x128xbf16, #tpu.memory_space<vmem>>, vector<128x128xbf16>
    %cst = arith.constant dense<0.000000e+00> : vector<128x128xf32>
    %2 = tpu.matmul %0, %1, %cst {dimension_numbers = #tpu.dot_dimension_numbers<[1], [0], [0], [1], [0, 0, 1, 1], [], []>} : vector<128x128xbf16>, vector<128x128xbf16>, vector<128x128xf32> -> vector<128x128xf32>
    %c0_3 = arith.constant 0 : index
    %c0_4 = arith.constant 0 : index
    %3 = vector.load %arg1[%c0_3, %c0_4] : memref<128x128xbf16, #tpu.memory_space<vmem>>, vector<128x128xbf16>
    %4 = arith.truncf %2 : vector<128x128xf32> to vector<128x128xbf16>
    %cst_5 = arith.constant dense<0.000000e+00> : vector<128x128xf32>
    %5 = tpu.matmul %3, %4, %cst_5 {dimension_numbers = #tpu.dot_dimension_numbers<[1], [0], [0], [1], [0, 0, 1, 1], [], []>} : vector<128x128xbf16>, vector<128x128xbf16>, vector<128x128xf32> -> vector<128x128xf32>
    %c0_6 = arith.constant 0 : index
    %c0_7 = arith.constant 0 : index
    %6 = vector.load %arg3[%c0_6, %c0_7] : memref<1x128xf32, #tpu.memory_space<vmem>>, vector<1x128xf32>
    %7 = vector.broadcast %6 : vector<1x128xf32> to vector<128x128xf32>
    %8 = arith.addf %5, %7 : vector<128x128xf32>
    %cst_8 = arith.constant 0.000000e+00 : f32
    %9 = vector.broadcast %cst_8 : f32 to vector<128x128xf32>
    %10 = arith.cmpf oge, %8, %9 : vector<128x128xf32>
    %cst_9 = arith.constant 2.000000e-01 : f32
    %11 = vector.broadcast %cst_9 : f32 to vector<128x128xf32>
    %12 = arith.mulf %11, %8 : vector<128x128xf32>
    %13 = arith.select %10, %8, %12 : vector<128x128xi1>, vector<128x128xf32>
    %14 = arith.truncf %13 : vector<128x128xf32> to vector<128x128xbf16>
    %c0_10 = arith.constant 0 : index
    %c0_11 = arith.constant 0 : index
    %15 = vector.load %arg4[%c0_10, %c0_11] : memref<128x128xbf16, #tpu.memory_space<vmem>>, vector<128x128xbf16>
    %cst_12 = arith.constant dense<0.000000e+00> : vector<128x128xf32>
    %16 = tpu.matmul %14, %15, %cst_12 {dimension_numbers = #tpu.dot_dimension_numbers<[1], [0], [0], [1], [0, 0, 1, 1], [], []>} : vector<128x128xbf16>, vector<128x128xbf16>, vector<128x128xf32> -> vector<128x128xf32>
    %c0_13 = arith.constant 0 : index
    %c0_14 = arith.constant 0 : index
    %17 = vector.load %arg1[%c0_13, %c0_14] : memref<128x128xbf16, #tpu.memory_space<vmem>>, vector<128x128xbf16>
    %18 = arith.truncf %16 : vector<128x128xf32> to vector<128x128xbf16>
    %cst_15 = arith.constant dense<0.000000e+00> : vector<128x128xf32>
    %19 = tpu.matmul %17, %18, %cst_15 {dimension_numbers = #tpu.dot_dimension_numbers<[1], [0], [0], [1], [0, 0, 1, 1], [], []>} : vector<128x128xbf16>, vector<128x128xbf16>, vector<128x128xf32> -> vector<128x128xf32>
    %c0_16 = arith.constant 0 : index
    %c0_17 = arith.constant 0 : index
    %20 = vector.load %arg5[%c0_16, %c0_17] : memref<1x128xf32, #tpu.memory_space<vmem>>, vector<1x128xf32>
    %21 = vector.broadcast %20 : vector<1x128xf32> to vector<128x128xf32>
    %22 = arith.addf %19, %21 : vector<128x128xf32>
    %23 = tpu.iota {dimensions = array<i32: 1>} : vector<128x128xi32>
    %c8_i32 = arith.constant 8 : i32
    %24 = vector.broadcast %c8_i32 : i32 to vector<128x128xi32>
    %25 = arith.cmpi slt, %23, %24 : vector<128x128xi32>
    %cst_18 = arith.constant -1.000000e+30 : f32
    %26 = vector.broadcast %cst_18 : f32 to vector<128x128xf32>
    %27 = arith.select %25, %22, %26 : vector<128x128xi1>, vector<128x128xf32>
    %cst_19 = arith.constant dense<0xFF800000> : vector<128xf32>
    %28 = vector.multi_reduction <maximumf>, %27, %cst_19 [1] : vector<128x128xf32> to vector<128xf32>
    %29 = vector.shape_cast %28 : vector<128xf32> to vector<128x1xf32>
    %30 = vector.broadcast %29 : vector<128x1xf32> to vector<128x128xf32>
    %31 = arith.subf %27, %30 : vector<128x128xf32>
    %32 = math.exp %31 : vector<128x128xf32>
    %cst_20 = arith.constant dense<0.000000e+00> : vector<128xf32>
    %33 = vector.multi_reduction <add>, %32, %cst_20 [1] : vector<128x128xf32> to vector<128xf32>
    %34 = vector.shape_cast %33 : vector<128xf32> to vector<128x1xf32>
    %35 = math.log %34 : vector<128x1xf32>
    %36 = vector.broadcast %35 : vector<128x1xf32> to vector<128x128xf32>
    %37 = arith.subf %31, %36 : vector<128x128xf32>
    %c0_21 = arith.constant 0 : index
    %c0_22 = arith.constant 0 : index
    %38 = vector.load %arg6[%c0_21, %c0_22] : memref<128x128xf32, #tpu.memory_space<vmem>>, vector<128x128xf32>
    tpu.vector_store %arg6[%c0_21, %c0_22], %37 {strides = array<i32>} : memref<128x128xf32, #tpu.memory_space<vmem>>, vector<128x128xf32>,
    return
  }
}

</mosaic_0001>

<llo_original>
// kernel: tpu_custom_call.1
$region0: #{tpu_custom_call.1}
  #allocation0 [shape = 'u32[]', space=smem, size = 0x4, offset = 0x4, fixed_abs, tag = 'smem constant byte address 0x4 - core index']
  #allocation1 [shape = 'u32[144,128]{1,0:T(1,128)}', space=vmem, size = 0x12000, scoped, tag = 'internal scratch']
  %s0 = inlined_call_operand.hbm [shape: bf16[128,128], index: 0, kind: input, shape index: {}]
  %s1 = inlined_call_operand.hbm [shape: bf16[128,128], index: 1, kind: input, shape index: {}]
  %s2 = inlined_call_operand.hbm [shape: bf16[128,128], index: 2, kind: input, shape index: {}]
  %s3 = inlined_call_operand.vmem [shape: f32[1,128], index: 3, kind: input, shape index: {}]
  %s4 = inlined_call_operand.hbm [shape: bf16[128,128], index: 4, kind: input, shape index: {}]
  %s5 = inlined_call_operand.vmem [shape: f32[1,128], index: 5, kind: input, shape index: {}]
  %s6 = inlined_call_operand.hbm [shape: f32[128,128], index: 6, kind: output, shape index: {}]
  %s7 = sld [smem:[#allocation0]]
  $region50: #{tpu_custom_call.1} parent=0
    _
  %s9 = ssub.s32 1, %s7
  %s10 = scalar_select 0, %s9, %s7
  $region1: #{tpu_custom_call.1} parent=0
    #allocation2 [shape = 'u8[32768]{0}', space=vmem, size = 0x8000, scoped, tag = 'input window, operand 0, single buffered']
    #allocation3 [shape = 's32[1]{0}', space=sflag, size = 0x4, scoped, tag = 'scoped memory for tpu_custom_call.1']
    #allocation4 [shape = 's32[1]{0}', space=sflag, size = 0x4, scoped, tag = 'scoped memory for tpu_custom_call.1']
    #allocation5 [shape = 'u8[32768]{0}', space=vmem, size = 0x8000, scoped, tag = 'input window, operand 1, single buffered']
    #allocation6 [shape = 's32[1]{0}', space=sflag, size = 0x4, scoped, tag = 'scoped memory for tpu_custom_call.1']
    #allocation7 [shape = 'u8[32768]{0}', space=vmem, size = 0x8000, scoped, tag = 'input window, operand 2, single buffered']
    #allocation8 [shape = 'u8[32768]{0}', space=vmem, size = 0x8000, scoped, tag = 'input window, operand 4, single buffered']
    #allocation9 [shape = 's32[1]{0}', space=sflag, size = 0x4, scoped, tag = 'scoped memory for tpu_custom_call.1']
    #allocation10 [shape = 'u8[65536]{0}', space=vmem, size = 0x10000, scoped, tag = 'output window, operand 0, single buffered']
    %11 = vsyncpa [#allocation3], 0
    %12 = vsyncpa [#allocation6], 0
    %13 = vsyncpa [#allocation9], 0
    %14 = vsyncpa [#allocation4], 0
    // Predicated region
    $region2: #{tpu_custom_call.1} parent=1 // pred_check
      _
    $region3: #{tpu_custom_call.1} parent=1 // pred_check_branch
      %16 = sbr.rel (0) target = $region5
    $region4: #{tpu_custom_call.1} parent=1 // pred_region
      %s18 = ssub.s32 1024, 1024
      %19 = vsyncadd [#allocation3], %s18
      %s20 = sshll.u32 [#allocation2], 4
      %s21 = int_to_ptr.vmem [resolvable:$true] %s20
      %26 = dma.hbm_to_vmem [thread:$0]  %s0, 1024, %s21, [#allocation3], 64, 64, 4
    $region5: #{tpu_custom_call.1} parent=1 // pred_fallthru
      _
    // Predicated region
    $region6: #{tpu_custom_call.1} parent=1 // pred_check
      _
    $region7: #{tpu_custom_call.1} parent=1 // pred_check_branch
      %28 = sbr.rel (0) target = $region9
    $region8: #{tpu_custom_call.1} parent=1 // pred_region
      %s30 = ssub.s32 1024, 1024
      %31 = vsyncadd [#allocation6], %s30
      %s32 = sshll.u32 [#allocation5], 4
      %s33 = int_to_ptr.vmem [resolvable:$true] %s32
      %38 = dma.hbm_to_vmem [thread:$0]  %s1, 1024, %s33, [#allocation6], 64, 64, 4
    $region9: #{tpu_custom_call.1} parent=1 // pred_fallthru
      _
    // Predicated region
    $region10: #{tpu_custom_call.1} parent=1 // pred_check
      _
    $region11: #{tpu_custom_call.1} parent=1 // pred_check_branch
      %40 = sbr.rel (0) target = $region13
    $region12: #{tpu_custom_call.1} parent=1 // pred_region
      %s42 = ssub.s32 1024, 1024
      %43 = vsyncadd [#allocation6], %s42
      %s44 = sshll.u32 [#allocation7], 4
      %s45 = int_to_ptr.vmem [resolvable:$true] %s44
      %50 = dma.hbm_to_vmem [thread:$0]  %s2, 1024, %s45, [#allocation6], 64, 64, 4
    $region13: #{tpu_custom_call.1} parent=1 // pred_fallthru
      _
    // Predicated region
    $region14: #{tpu_custom_call.1} parent=1 // pred_check
      _
    $region15: #{tpu_custom_call.1} parent=1 // pred_check_branch
      %52 = sbr.rel (0) target = $region17
    $region16: #{tpu_custom_call.1} parent=1 // pred_region
      _
    $region17: #{tpu_custom_call.1} parent=1 // pred_fallthru
      _
    // Predicated region
    $region18: #{tpu_custom_call.1} parent=1 // pred_check
      _
    $region19: #{tpu_custom_call.1} parent=1 // pred_check_branch
      %54 = sbr.rel (0) target = $region21
    $region20: #{tpu_custom_call.1} parent=1 // pred_region
      %s56 = ssub.s32 1024, 1024
      %57 = vsyncadd [#allocation9], %s56
      %s58 = sshll.u32 [#allocation8], 4
      %s59 = int_to_ptr.vmem [resolvable:$true] %s58
      %64 = dma.hbm_to_vmem [thread:$0]  %s4, 1024, %s59, [#allocation9], 64, 64, 4
    $region21: #{tpu_custom_call.1} parent=1 // pred_fallthru
      _
    // Predicated region
    $region22: #{tpu_custom_call.1} parent=1 // pred_check
      _
    $region23: #{tpu_custom_call.1} parent=1 // pred_check_branch
      %66 = sbr.rel (0) target = $region25
    $region24: #{tpu_custom_call.1} parent=1 // pred_region
      _
    $region25: #{tpu_custom_call.1} parent=1 // pred_fallthru
      _
    // Predicated region
    $region26: #{tpu_custom_call.1} parent=1 // pred_check
      _
    $region27: #{tpu_custom_call.1} parent=1 // pred_check_branch
      %68 = sbr.rel (0) target = $region29
    $region28: #{tpu_custom_call.1} parent=1 // pred_region
      %69 = dma.done [#allocation3], 1024
    $region29: #{tpu_custom_call.1} parent=1 // pred_fallthru
      _
    // Predicated region
    $region30: #{tpu_custom_call.1} parent=1 // pred_check
      _
    $region31: #{tpu_custom_call.1} parent=1 // pred_check_branch
      %71 = sbr.rel (0) target = $region33
    $region32: #{tpu_custom_call.1} parent=1 // pred_region
      %72 = dma.done [#allocation6], 1024
    $region33: #{tpu_custom_call.1} parent=1 // pred_fallthru
      _
    // Predicated region
    $region34: #{tpu_custom_call.1} parent=1 // pred_check
      _
    $region35: #{tpu_custom_call.1} parent=1 // pred_check_branch
      %74 = sbr.rel (0) target = $region37
    $region36: #{tpu_custom_call.1} parent=1 // pred_region
      %75 = dma.done [#allocation6], 1024
    $region37: #{tpu_custom_call.1} parent=1 // pred_fallthru
      _
    // Predicated region
    $region38: #{tpu_custom_call.1} parent=1 // pred_check
      _
    $region39: #{tpu_custom_call.1} parent=1 // pred_check_branch
      %77 = sbr.rel (0) target = $region41
    $region40: #{tpu_custom_call.1} parent=1 // pred_region
      %78 = dma.done [#allocation9], 1024
    $region41: #{tpu_custom_call.1} parent=1 // pred_fallthru
      _
    %v80 = vld [vmem:[#allocation2] sm:$0xf]
    %v81 = vld [vmem:[#allocation2 + $0x4] sm:$0xf]
    %v82 = vld [vmem:[#allocation2 + $0x8] sm:$0xf]
    %v83 = vld [vmem:[#allocation2 + $0xc] sm:$0xf]
    %v84 = vld [vmem:[#allocation2 + $0x10] sm:$0xf]
    %v85 = vld [vmem:[#allocation2 + $0x14] sm:$0xf]
    %v86 = vld [vmem:[#allocation2 + $0x18] sm:$0xf]
    %v87 = vld [vmem:[#allocation2 + $0x1c] sm:$0xf]
    %v88 = vld [vmem:[#allocation2 + $0x20] sm:$0xf]
    %v89 = vld [vmem:[#allocation2 + $0x24] sm:$0xf]
    %v90 = vld [vmem:[#allocation2 + $0x28] sm:$0xf]
    %v91 = vld [vmem:[#allocation2 + $0x2c] sm:$0xf]
    %v92 = vld [vmem:[#allocation2 + $0x30] sm:$0xf]
    %v93 = vld [vmem:[#allocation2 + $0x34] sm:$0xf]
    %v94 = vld [vmem:[#allocation2 + $0x38] sm:$0xf]
    %v95 = vld [vmem:[#allocation2 + $0x3c] sm:$0xf]
    %v96 = vld [vmem:[#allocation7] sm:$0xf]
    %v97 = vld [vmem:[#allocation7 + $0x4] sm:$0xf]
    %v98 = vld [vmem:[#allocation7 + $0x8] sm:$0xf]
    %v99 = vld [vmem:[#allocation7 + $0xc] sm:$0xf]
    %v100 = vld [vmem:[#allocation7 + $0x10] sm:$0xf]
    %v101 = vld [vmem:[#allocation7 + $0x14] sm:$0xf]
    %v102 = vld [vmem:[#allocation7 + $0x18] sm:$0xf]
    %v103 = vld [vmem:[#allocation7 + $0x1c] sm:$0xf]
    %v104 = vld [vmem:[#allocation7 + $0x20] sm:$0xf]
    %v105 = vld [vmem:[#allocation7 + $0x24] sm:$0xf]
    %v106 = vld [vmem:[#allocation7 + $0x28] sm:$0xf]
    %v107 = vld [vmem:[#allocation7 + $0x2c] sm:$0xf]
    %v108 = vld [vmem:[#allocation7 + $0x30] sm:$0xf]
    %v109 = vld [vmem:[#allocation7 + $0x34] sm:$0xf]
    %v110 = vld [vmem:[#allocation7 + $0x38] sm:$0xf]
    %v111 = vld [vmem:[#allocation7 + $0x3c] sm:$0xf]
    %v128 = vunpack.c.l.b16 %v80
    %v129 = vunpack.c.l.b16 %v81
    %v130 = vunpack.c.l.b16 %v82
    %v131 = vunpack.c.l.b16 %v83
    %v132 = vunpack.c.l.b16 %v84
    %v133 = vunpack.c.l.b16 %v85
    %v134 = vunpack.c.l.b16 %v86
    %v135 = vunpack.c.l.b16 %v87
    %v136 = vunpack.c.l.b16 %v88
    %v137 = vunpack.c.l.b16 %v89
    %v138 = vunpack.c.l.b16 %v90
    %v139 = vunpack.c.l.b16 %v91
    %v140 = vunpack.c.l.b16 %v92
    %v141 = vunpack.c.l.b16 %v93
    %v142 = vunpack.c.l.b16 %v94
    %v143 = vunpack.c.l.b16 %v95
    %v144 = vpack.c.b16 %v129, %v128
    %v145 = vpack.c.b16 %v131, %v130
    %v146 = vpack.c.b16 %v133, %v132
    %v147 = vpack.c.b16 %v135, %v134
    %v148 = vpack.c.b16 %v137, %v136
    %v149 = vpack.c.b16 %v139, %v138
    %v150 = vpack.c.b16 %v141, %v140
    %v151 = vpack.c.b16 %v143, %v142
    %v176 = vunpack.c.l.b16 %v96
    %v177 = vunpack.c.l.b16 %v97
    %v178 = vunpack.c.l.b16 %v98
    %v179 = vunpack.c.l.b16 %v99
    %v180 = vunpack.c.l.b16 %v100
    %v181 = vunpack.c.l.b16 %v101
    %v182 = vunpack.c.l.b16 %v102
    %v183 = vunpack.c.l.b16 %v103
    %v184 = vunpack.c.l.b16 %v104
    %v185 = vunpack.c.l.b16 %v105
    %v186 = vunpack.c.l.b16 %v106
    %v187 = vunpack.c.l.b16 %v107
    %v188 = vunpack.c.l.b16 %v108
    %v189 = vunpack.c.l.b16 %v109
    %v190 = vunpack.c.l.b16 %v110
    %v191 = vunpack.c.l.b16 %v111
    %v192 = vpack.c.b16 %v177, %v176
    %v193 = vpack.c.b16 %v179, %v178
    %v194 = vpack.c.b16 %v181, %v180
    %v195 = vpack.c.b16 %v183, %v182
    %v196 = vpack.c.b16 %v185, %v184
    %v197 = vpack.c.b16 %v187, %v186
    %v198 = vpack.c.b16 %v189, %v188
    %v199 = vpack.c.b16 %v191, %v190
    %208 = vmatprep.subr.bf16.mxu0 0
    %209 = vmatpush1.bf16.msra.mxu0 %v192
    %210 = vmatprep.subr.bf16.mxu0 0
    %211 = vmatpush1.bf16.msra.mxu0 %v193
    %212 = vmatprep.subr.bf16.mxu0 0
    %213 = vmatpush1.bf16.msra.mxu0 %v194
    %214 = vmatprep.subr.bf16.mxu0 0
    %215 = vmatpush1.bf16.msra.mxu0 %v195
    %216 = vmatprep.subr.bf16.mxu0 0
    %217 = vmatpush1.bf16.msra.mxu0 %v196
    %218 = vmatprep.subr.bf16.mxu0 0
    %219 = vmatpush1.bf16.msra.mxu0 %v197
    %220 = vmatprep.subr.bf16.mxu0 0
    %221 = vmatpush1.bf16.msra.mxu0 %v198
    %222 = vmatprep.subr.bf16.mxu0 0
    %223 = vmatpush1.bf16.msra.mxu0 %v199
    %224 = vmatprep.subr.bf16.mxu0 0
    %225 = vmatpush1.bf16.msra.mxu0 0
    %226 = vmatprep.subr.bf16.mxu0 0
    %227 = vmatpush1.bf16.msra.mxu0 0
    %228 = vmatprep.subr.bf16.mxu0 0
    %229 = vmatpush1.bf16.msra.mxu0 0
    %230 = vmatprep.subr.bf16.mxu0 0
    %231 = vmatpush1.bf16.msra.mxu0 0
    %232 = vmatprep.subr.bf16.mxu0 0
    %233 = vmatpush1.bf16.msra.mxu0 0
    %234 = vmatprep.subr.bf16.mxu0 0
    %235 = vmatpush1.bf16.msra.mxu0 0
    %236 = vmatprep.subr.bf16.mxu0 0
    %237 = vmatpush1.bf16.msra.mxu0 0
    %238 = vmatprep.subr.bf16.mxu0 0
    %239 = vmatpush1.bf16.msra.mxu0 0
    %240 = vmatprep.mubr.bf16.mxu0 0
    %241 = vmatmul.mubr.bf16.gmra.mrb[0].mxu0 %v144
    %v242 = vpop.f32.mrb[0].mxu0
    %v243 = vadd.f32 0.0, %v242
    %v244 = vpop.f32.mrb[0].mxu0
    %v245 = vpop.f32.mrb[0].mxu0
    %v246 = vadd.f32 0.0, %v245
    %v247 = vpop.f32.mrb[0].mxu0
    %248 = vmatprep.mubr.bf16.mxu0 0
    %249 = vmatmul.mubr.bf16.gmra.mrb[0].mxu0 %v145
    %v250 = vpop.f32.mrb[0].mxu0
    %v251 = vadd.f32 0.0, %v250
    %v252 = vpop.f32.mrb[0].mxu0
    %v253 = vpop.f32.mrb[0].mxu0
    %v254 = vadd.f32 0.0, %v253
    %v255 = vpop.f32.mrb[0].mxu0
    %256 = vmatprep.mubr.bf16.mxu0 0
    %257 = vmatmul.mubr.bf16.gmra.mrb[0].mxu0 %v146
    %v258 = vpop.f32.mrb[0].mxu0
    %v259 = vadd.f32 0.0, %v258
    %v260 = vpop.f32.mrb[0].mxu0
    %v261 = vpop.f32.mrb[0].mxu0
    %v262 = vadd.f32 0.0, %v261
    %v263 = vpop.f32.mrb[0].mxu0
    %264 = vmatprep.mubr.bf16.mxu0 0
    %265 = vmatmul.mubr.bf16.gmra.mrb[0].mxu0 %v147
    %v266 = vpop.f32.mrb[0].mxu0
    %v267 = vadd.f32 0.0, %v266
    %v268 = vpop.f32.mrb[0].mxu0
    %v269 = vpop.f32.mrb[0].mxu0
    %v270 = vadd.f32 0.0, %v269
    %v271 = vpop.f32.mrb[0].mxu0
    %272 = vmatprep.mubr.bf16.mxu0 0
    %273 = vmatmul.mubr.bf16.gmra.mrb[0].mxu0 %v148
    %v274 = vpop.f32.mrb[0].mxu0
    %v275 = vadd.f32 0.0, %v274
    %v276 = vpop.f32.mrb[0].mxu0
    %v277 = vpop.f32.mrb[0].mxu0
    %v278 = vadd.f32 0.0, %v277
    %v279 = vpop.f32.mrb[0].mxu0
    %280 = vmatprep.mubr.bf16.mxu0 0
    %281 = vmatmul.mubr.bf16.gmra.mrb[0].mxu0 %v149
    %v282 = vpop.f32.mrb[0].mxu0
    %v283 = vadd.f32 0.0, %v282
    %v284 = vpop.f32.mrb[0].mxu0
    %v285 = vpop.f32.mrb[0].mxu0
    %v286 = vadd.f32 0.0, %v285
    %v287 = vpop.f32.mrb[0].mxu0
    %288 = vmatprep.mubr.bf16.mxu0 0
    %289 = vmatmul.mubr.bf16.gmra.mrb[0].mxu0 %v150
    %v290 = vpop.f32.mrb[0].mxu0
    %v291 = vadd.f32 0.0, %v290
    %v292 = vpop.f32.mrb[0].mxu0
    %v293 = vpop.f32.mrb[0].mxu0
    %v294 = vadd.f32 0.0, %v293
    %v295 = vpop.f32.mrb[0].mxu0
    %296 = vmatprep.mubr.bf16.mxu0 0
    %297 = vmatmul.mubr.bf16.gmra.mrb[0].mxu0 %v151
    %v298 = vpop.f32.mrb[0].mxu0
    %v299 = vadd.f32 0.0, %v298
    %v300 = vpop.f32.mrb[0].mxu0
    %v301 = vpop.f32.mrb[0].mxu0
    %v302 = vadd.f32 0.0, %v301
    %v303 = vpop.f32.mrb[0].mxu0
    %304 = vdwg.mxu0
    %v305 = vld [vmem:[#allocation5] sm:$0xf]
    %v306 = vld [vmem:[#allocation5 + $0x4] sm:$0xf]
    %v307 = vld [vmem:[#allocation5 + $0x8] sm:$0xf]
    %v308 = vld [vmem:[#allocation5 + $0xc] sm:$0xf]
    %v309 = vld [vmem:[#allocation5 + $0x10] sm:$0xf]
    %v310 = vld [vmem:[#allocation5 + $0x14] sm:$0xf]
    %v311 = vld [vmem:[#allocation5 + $0x18] sm:$0xf]
    %v312 = vld [vmem:[#allocation5 + $0x1c] sm:$0xf]
    %v313 = vld [vmem:[#allocation5 + $0x20] sm:$0xf]
    %v314 = vld [vmem:[#allocation5 + $0x24] sm:$0xf]
    %v315 = vld [vmem:[#allocation5 + $0x28] sm:$0xf]
    %v316 = vld [vmem:[#allocation5 + $0x2c] sm:$0xf]
    %v317 = vld [vmem:[#allocation5 + $0x30] sm:$0xf]
    %v318 = vld [vmem:[#allocation5 + $0x34] sm:$0xf]
    %v319 = vld [vmem:[#allocation5 + $0x38] sm:$0xf]
    %v320 = vld [vmem:[#allocation5 + $0x3c] sm:$0xf]
    %v321 = vpack.c.bf16 %v246, %v243
    %v322 = vpack.c.bf16 %v254, %v251
    %v323 = vpack.c.bf16 %v262, %v259
    %v324 = vpack.c.bf16 %v270, %v267
    %v325 = vpack.c.bf16 %v278, %v275
    %v326 = vpack.c.bf16 %v286, %v283
    %v327 = vpack.c.bf16 %v294, %v291
    %v328 = vpack.c.bf16 %v302, %v299
    %v329 = vld [vmem:[%s3] sm:$0x1]
    %v331 = vlaneseq
    %v332 = vshrl.u32 %v331, 7
    %v333 = vsub.s32 0, %v332
    %v334 = vrot.slane %v329, %v333
    %v352 = vunpack.c.l.b16 %v305
    %v353 = vunpack.c.l.b16 %v306
    %v354 = vunpack.c.l.b16 %v307
    %v355 = vunpack.c.l.b16 %v308
    %v356 = vunpack.c.l.b16 %v309
    %v357 = vunpack.c.l.b16 %v310
    %v358 = vunpack.c.l.b16 %v311
    %v359 = vunpack.c.l.b16 %v312
    %v360 = vunpack.c.l.b16 %v313
    %v361 = vunpack.c.l.b16 %v314
    %v362 = vunpack.c.l.b16 %v315
    %v363 = vunpack.c.l.b16 %v316
    %v364 = vunpack.c.l.b16 %v317
    %v365 = vunpack.c.l.b16 %v318
    %v366 = vunpack.c.l.b16 %v319
    %v367 = vunpack.c.l.b16 %v320
    %v368 = vpack.c.b16 %v353, %v352
    %v369 = vpack.c.b16 %v355, %v354
    %v370 = vpack.c.b16 %v357, %v356
    %v371 = vpack.c.b16 %v359, %v358
    %v372 = vpack.c.b16 %v361, %v360
    %v373 = vpack.c.b16 %v363, %v362
    %v374 = vpack.c.b16 %v365, %v364
    %v375 = vpack.c.b16 %v367, %v366
    %384 = vmatprep.subr.bf16.mxu0 0
    %385 = vmatpush1.bf16.msra.mxu0 %v321
    %386 = vmatprep.subr.bf16.mxu0 0
    %387 = vmatpush1.bf16.msra.mxu0 %v322
    %388 = vmatprep.subr.bf16.mxu0 0
    %389 = vmatpush1.bf16.msra.mxu0 %v323
    %390 = vmatprep.subr.bf16.mxu0 0
    %391 = vmatpush1.bf16.msra.mxu0 %v324
    %392 = vmatprep.subr.bf16.mxu0 0
    %393 = vmatpush1.bf16.msra.mxu0 %v325
    %394 = vmatprep.subr.bf16.mxu0 0
    %395 = vmatpush1.bf16.msra.mxu0 %v326
    %396 = vmatprep.subr.bf16.mxu0 0
    %397 = vmatpush1.bf16.msra.mxu0 %v327
    %398 = vmatprep.subr.bf16.mxu0 0
    %399 = vmatpush1.bf16.msra.mxu0 %v328
    %400 = vmatprep.subr.bf16.mxu0 0
    %401 = vmatpush1.bf16.msra.mxu0 0
    %402 = vmatprep.subr.bf16.mxu0 0
    %403 = vmatpush1.bf16.msra.mxu0 0
    %404 = vmatprep.subr.bf16.mxu0 0
    %405 = vmatpush1.bf16.msra.mxu0 0
    %406 = vmatprep.subr.bf16.mxu0 0
    %407 = vmatpush1.bf16.msra.mxu0 0
    %408 = vmatprep.subr.bf16.mxu0 0
    %409 = vmatpush1.bf16.msra.mxu0 0
    %410 = vmatprep.subr.bf16.mxu0 0
    %411 = vmatpush1.bf16.msra.mxu0 0
    %412 = vmatprep.subr.bf16.mxu0 0
    %413 = vmatpush1.bf16.msra.mxu0 0
    %414 = vmatprep.subr.bf16.mxu0 0
    %415 = vmatpush1.bf16.msra.mxu0 0
    %416 = vmatprep.mubr.bf16.mxu0 0
    %417 = vmatmul.mubr.bf16.gmra.mrb[0].mxu0 %v368
    %v418 = vpop.f32.mrb[0].mxu0
    %v419 = vadd.f32 %v334, %v418
    %v420 = vpop.f32.mrb[0].mxu0
    %v421 = vpop.f32.mrb[0].mxu0
    %v422 = vadd.f32 %v334, %v421
    %v423 = vpop.f32.mrb[0].mxu0
    %424 = vmatprep.mubr.bf16.mxu0 0
    %425 = vmatmul.mubr.bf16.gmra.mrb[0].mxu0 %v369
    %v426 = vpop.f32.mrb[0].mxu0
    %v427 = vadd.f32 %v334, %v426
    %v428 = vpop.f32.mrb[0].mxu0
    %v429 = vpop.f32.mrb[0].mxu0
    %v430 = vadd.f32 %v334, %v429
    %v431 = vpop.f32.mrb[0].mxu0
    %432 = vmatprep.mubr.bf16.mxu0 0
    %433 = vmatmul.mubr.bf16.gmra.mrb[0].mxu0 %v370
    %v434 = vpop.f32.mrb[0].mxu0
    %v435 = vadd.f32 %v334, %v434
    %v436 = vpop.f32.mrb[0].mxu0
    %v437 = vpop.f32.mrb[0].mxu0
    %v438 = vadd.f32 %v334, %v437
    %v439 = vpop.f32.mrb[0].mxu0
    %440 = vmatprep.mubr.bf16.mxu0 0
    %441 = vmatmul.mubr.bf16.gmra.mrb[0].mxu0 %v371
    %v442 = vpop.f32.mrb[0].mxu0
    %v443 = vadd.f32 %v334, %v442
    %v444 = vpop.f32.mrb[0].mxu0
    %v445 = vpop.f32.mrb[0].mxu0
    %v446 = vadd.f32 %v334, %v445
    %v447 = vpop.f32.mrb[0].mxu0
    %448 = vmatprep.mubr.bf16.mxu0 0
    %449 = vmatmul.mubr.bf16.gmra.mrb[0].mxu0 %v372
    %v450 = vpop.f32.mrb[0].mxu0
    %v451 = vadd.f32 %v334, %v450
    %v452 = vpop.f32.mrb[0].mxu0
    %v453 = vpop.f32.mrb[0].mxu0
    %v454 = vadd.f32 %v334, %v453
    %v455 = vpop.f32.mrb[0].mxu0
    %456 = vmatprep.mubr.bf16.mxu0 0
    %457 = vmatmul.mubr.bf16.gmra.mrb[0].mxu0 %v373
    %v458 = vpop.f32.mrb[0].mxu0
    %v459 = vadd.f32 %v334, %v458
    %v460 = vpop.f32.mrb[0].mxu0
    %v461 = vpop.f32.mrb[0].mxu0
    %v462 = vadd.f32 %v334, %v461
    %v463 = vpop.f32.mrb[0].mxu0
    %464 = vmatprep.mubr.bf16.mxu0 0
    %465 = vmatmul.mubr.bf16.gmra.mrb[0].mxu0 %v374
    %v466 = vpop.f32.mrb[0].mxu0
    %v467 = vadd.f32 %v334, %v466
    %v468 = vpop.f32.mrb[0].mxu0
    %v469 = vpop.f32.mrb[0].mxu0
    %v470 = vadd.f32 %v334, %v469
    %v471 = vpop.f32.mrb[0].mxu0
    %472 = vmatprep.mubr.bf16.mxu0 0
    %473 = vmatmul.mubr.bf16.gmra.mrb[0].mxu0 %v375
    %v474 = vpop.f32.mrb[0].mxu0
    %v475 = vadd.f32 %v334, %v474
    %v476 = vpop.f32.mrb[0].mxu0
    %v477 = vpop.f32.mrb[0].mxu0
    %v478 = vadd.f32 %v334, %v477
    %v479 = vpop.f32.mrb[0].mxu0
    %480 = vdwg.mxu0
    %vm481 = vcmp.ge.f32.partialorder %v419, 0.0
    %vm482 = vcmp.ge.f32.partialorder %v422, 0.0
    %vm483 = vcmp.ge.f32.partialorder %v427, 0.0
    %vm484 = vcmp.ge.f32.partialorder %v430, 0.0
    %vm485 = vcmp.ge.f32.partialorder %v435, 0.0
    %vm486 = vcmp.ge.f32.partialorder %v438, 0.0
    %vm487 = vcmp.ge.f32.partialorder %v443, 0.0
    %vm488 = vcmp.ge.f32.partialorder %v446, 0.0
    %vm489 = vcmp.ge.f32.partialorder %v451, 0.0
    %vm490 = vcmp.ge.f32.partialorder %v454, 0.0
    %vm491 = vcmp.ge.f32.partialorder %v459, 0.0
    %vm492 = vcmp.ge.f32.partialorder %v462, 0.0
    %vm493 = vcmp.ge.f32.partialorder %v467, 0.0
    %vm494 = vcmp.ge.f32.partialorder %v470, 0.0
    %vm495 = vcmp.ge.f32.partialorder %v475, 0.0
    %vm496 = vcmp.ge.f32.partialorder %v478, 0.0
    %v497 = vmul.f32 %v419, 0.2
    %v498 = vmul.f32 %v422, 0.2
    %v499 = vmul.f32 %v427, 0.2
    %v500 = vmul.f32 %v430, 0.2
    %v501 = vmul.f32 %v435, 0.2
    %v502 = vmul.f32 %v438, 0.2
    %v503 = vmul.f32 %v443, 0.2
    %v504 = vmul.f32 %v446, 0.2
    %v505 = vmul.f32 %v451, 0.2
    %v506 = vmul.f32 %v454, 0.2
    %v507 = vmul.f32 %v459, 0.2
    %v508 = vmul.f32 %v462, 0.2
    %v509 = vmul.f32 %v467, 0.2
    %v510 = vmul.f32 %v470, 0.2
    %v511 = vmul.f32 %v475, 0.2
    %v512 = vmul.f32 %v478, 0.2
    %v513 = vsel %vm481, %v419, %v497
    %v514 = vsel %vm482, %v422, %v498
    %v515 = vsel %vm483, %v427, %v499
    %v516 = vsel %vm484, %v430, %v500
    %v517 = vsel %vm485, %v435, %v501
    %v518 = vsel %vm486, %v438, %v502
    %v519 = vsel %vm487, %v443, %v503
    %v520 = vsel %vm488, %v446, %v504
    %v521 = vsel %vm489, %v451, %v505
    %v522 = vsel %vm490, %v454, %v506
    %v523 = vsel %vm491, %v459, %v507
    %v524 = vsel %vm492, %v462, %v508
    %v525 = vsel %vm493, %v467, %v509
    %v526 = vsel %vm494, %v470, %v510
    %v527 = vsel %vm495, %v475, %v511
    %v528 = vsel %vm496, %v478, %v512
    %v529 = vpack.c.bf16 %v514, %v513
    %v530 = vpack.c.bf16 %v516, %v515
    %v531 = vpack.c.bf16 %v518, %v517
    %v532 = vpack.c.bf16 %v520, %v519
    %v533 = vpack.c.bf16 %v522, %v521
    %v534 = vpack.c.bf16 %v524, %v523
    %v535 = vpack.c.bf16 %v526, %v525
    %v536 = vpack.c.bf16 %v528, %v527
    %v537 = vld [vmem:[#allocation8] sm:$0xf]
    %v538 = vld [vmem:[#allocation8 + $0x4] sm:$0xf]
    %v539 = vld [vmem:[#allocation8 + $0x8] sm:$0xf]
    %v540 = vld [vmem:[#allocation8 + $0xc] sm:$0xf]
    %v541 = vld [vmem:[#allocation8 + $0x10] sm:$0xf]
    %v542 = vld [vmem:[#allocation8 + $0x14] sm:$0xf]
    %v543 = vld [vmem:[#allocation8 + $0x18] sm:$0xf]
    %v544 = vld [vmem:[#allocation8 + $0x1c] sm:$0xf]
    %v545 = vld [vmem:[#allocation8 + $0x20] sm:$0xf]
    %v546 = vld [vmem:[#allocation8 + $0x24] sm:$0xf]
    %v547 = vld [vmem:[#allocation8 + $0x28] sm:$0xf]
    %v548 = vld [vmem:[#allocation8 + $0x2c] sm:$0xf]
    %v549 = vld [vmem:[#allocation8 + $0x30] sm:$0xf]
    %v550 = vld [vmem:[#allocation8 + $0x34] sm:$0xf]
    %v551 = vld [vmem:[#allocation8 + $0x38] sm:$0xf]
    %v552 = vld [vmem:[#allocation8 + $0x3c] sm:$0xf]
    %v569 = vunpack.c.l.b16 %v537
    %v570 = vunpack.c.l.b16 %v538
    %v571 = vunpack.c.l.b16 %v539
    %v572 = vunpack.c.l.b16 %v540
    %v573 = vunpack.c.l.b16 %v541
    %v574 = vunpack.c.l.b16 %v542
    %v575 = vunpack.c.l.b16 %v543
    %v576 = vunpack.c.l.b16 %v544
    %v577 = vunpack.c.l.b16 %v545
    %v578 = vunpack.c.l.b16 %v546
    %v579 = vunpack.c.l.b16 %v547
    %v580 = vunpack.c.l.b16 %v548
    %v581 = vunpack.c.l.b16 %v549
    %v582 = vunpack.c.l.b16 %v550
    %v583 = vunpack.c.l.b16 %v551
    %v584 = vunpack.c.l.b16 %v552
    %v585 = vpack.c.b16 %v570, %v569
    %v586 = vpack.c.b16 %v572, %v571
    %v587 = vpack.c.b16 %v574, %v573
    %v588 = vpack.c.b16 %v576, %v575
    %v589 = vpack.c.b16 %v578, %v577
    %v590 = vpack.c.b16 %v580, %v579
    %v591 = vpack.c.b16 %v582, %v581
    %v592 = vpack.c.b16 %v584, %v583
    %601 = vmatprep.subr.bf16.mxu0 0
    %602 = vmatpush1.bf16.msra.mxu0 %v585
    %603 = vmatprep.subr.bf16.mxu0 0
    %604 = vmatpush1.bf16.msra.mxu0 %v586
    %605 = vmatprep.subr.bf16.mxu0 0
    %606 = vmatpush1.bf16.msra.mxu0 %v587
    %607 = vmatprep.subr.bf16.mxu0 0
    %608 = vmatpush1.bf16.msra.mxu0 %v588
    %609 = vmatprep.subr.bf16.mxu0 0
    %610 = vmatpush1.bf16.msra.mxu0 %v589
    %611 = vmatprep.subr.bf16.mxu0 0
    %612 = vmatpush1.bf16.msra.mxu0 %v590
    %613 = vmatprep.subr.bf16.mxu0 0
    %614 = vmatpush1.bf16.msra.mxu0 %v591
    %615 = vmatprep.subr.bf16.mxu0 0
    %616 = vmatpush1.bf16.msra.mxu0 %v592
    %617 = vmatprep.subr.bf16.mxu0 0
    %618 = vmatpush1.bf16.msra.mxu0 0
    %619 = vmatprep.subr.bf16.mxu0 0
    %620 = vmatpush1.bf16.msra.mxu0 0
    %621 = vmatprep.subr.bf16.mxu0 0
    %622 = vmatpush1.bf16.msra.mxu0 0
    %623 = vmatprep.subr.bf16.mxu0 0
    %624 = vmatpush1.bf16.msra.mxu0 0
    %625 = vmatprep.subr.bf16.mxu0 0
    %626 = vmatpush1.bf16.msra.mxu0 0
    %627 = vmatprep.subr.bf16.mxu0 0
    %628 = vmatpush1.bf16.msra.mxu0 0
    %629 = vmatprep.subr.bf16.mxu0 0
    %630 = vmatpush1.bf16.msra.mxu0 0
    %631 = vmatprep.subr.bf16.mxu0 0
    %632 = vmatpush1.bf16.msra.mxu0 0
    %633 = vmatprep.mubr.bf16.mxu0 0
    %634 = vmatmul.mubr.bf16.gmra.mrb[0].mxu0 %v529
    %v635 = vpop.f32.mrb[0].mxu0
    %v636 = vadd.f32 0.0, %v635
    %v637 = vpop.f32.mrb[0].mxu0
    %v638 = vpop.f32.mrb[0].mxu0
    %v639 = vadd.f32 0.0, %v638
    %v640 = vpop.f32.mrb[0].mxu0
    %641 = vmatprep.mubr.bf16.mxu0 0
    %642 = vmatmul.mubr.bf16.gmra.mrb[0].mxu0 %v530
    %v643 = vpop.f32.mrb[0].mxu0
    %v644 = vadd.f32 0.0, %v643
    %v645 = vpop.f32.mrb[0].mxu0
    %v646 = vpop.f32.mrb[0].mxu0
    %v647 = vadd.f32 0.0, %v646
    %v648 = vpop.f32.mrb[0].mxu0
    %649 = vmatprep.mubr.bf16.mxu0 0
    %650 = vmatmul.mubr.bf16.gmra.mrb[0].mxu0 %v531
    %v651 = vpop.f32.mrb[0].mxu0
    %v652 = vadd.f32 0.0, %v651
    %v653 = vpop.f32.mrb[0].mxu0
    %v654 = vpop.f32.mrb[0].mxu0
    %v655 = vadd.f32 0.0, %v654
    %v656 = vpop.f32.mrb[0].mxu0
    %657 = vmatprep.mubr.bf16.mxu0 0
    %658 = vmatmul.mubr.bf16.gmra.mrb[0].mxu0 %v532
    %v659 = vpop.f32.mrb[0].mxu0
    %v660 = vadd.f32 0.0, %v659
    %v661 = vpop.f32.mrb[0].mxu0
    %v662 = vpop.f32.mrb[0].mxu0
    %v663 = vadd.f32 0.0, %v662
    %v664 = vpop.f32.mrb[0].mxu0
    %665 = vmatprep.mubr.bf16.mxu0 0
    %666 = vmatmul.mubr.bf16.gmra.mrb[0].mxu0 %v533
    %v667 = vpop.f32.mrb[0].mxu0
    %v668 = vadd.f32 0.0, %v667
    %v669 = vpop.f32.mrb[0].mxu0
    %v670 = vpop.f32.mrb[0].mxu0
    %v671 = vadd.f32 0.0, %v670
    %v672 = vpop.f32.mrb[0].mxu0
    %673 = vmatprep.mubr.bf16.mxu0 0
    %674 = vmatmul.mubr.bf16.gmra.mrb[0].mxu0 %v534
    %v675 = vpop.f32.mrb[0].mxu0
    %v676 = vadd.f32 0.0, %v675
    %v677 = vpop.f32.mrb[0].mxu0
    %v678 = vpop.f32.mrb[0].mxu0
    %v679 = vadd.f32 0.0, %v678
    %v680 = vpop.f32.mrb[0].mxu0
    %681 = vmatprep.mubr.bf16.mxu0 0
    %682 = vmatmul.mubr.bf16.gmra.mrb[0].mxu0 %v535
    %v683 = vpop.f32.mrb[0].mxu0
    %v684 = vadd.f32 0.0, %v683
    %v685 = vpop.f32.mrb[0].mxu0
    %v686 = vpop.f32.mrb[0].mxu0
    %v687 = vadd.f32 0.0, %v686
    %v688 = vpop.f32.mrb[0].mxu0
    %689 = vmatprep.mubr.bf16.mxu0 0
    %690 = vmatmul.mubr.bf16.gmra.mrb[0].mxu0 %v536
    %v691 = vpop.f32.mrb[0].mxu0
    %v692 = vadd.f32 0.0, %v691
    %v693 = vpop.f32.mrb[0].mxu0
    %v694 = vpop.f32.mrb[0].mxu0
    %v695 = vadd.f32 0.0, %v694
    %v696 = vpop.f32.mrb[0].mxu0
    %697 = vdwg.mxu0
    %v698 = vpack.c.bf16 %v639, %v636
    %v699 = vpack.c.bf16 %v647, %v644
    %v700 = vpack.c.bf16 %v655, %v652
    %v701 = vpack.c.bf16 %v663, %v660
    %v702 = vpack.c.bf16 %v671, %v668
    %v703 = vpack.c.bf16 %v679, %v676
    %v704 = vpack.c.bf16 %v687, %v684
    %v705 = vpack.c.bf16 %v695, %v692
    %v706 = vld [vmem:[%s5] sm:$0x1]
    %v708 = vlaneseq
    %v709 = vshrl.u32 %v708, 7
    %v710 = vsub.s32 0, %v709
    %v711 = vrot.slane %v706, %v710
    %713 = vmatprep.subr.bf16.mxu0 0
    %714 = vmatpush1.bf16.msra.mxu0 %v698
    %715 = vmatprep.subr.bf16.mxu0 0
    %716 = vmatpush1.bf16.msra.mxu0 %v699
    %717 = vmatprep.subr.bf16.mxu0 0
    %718 = vmatpush1.bf16.msra.mxu0 %v700
    %719 = vmatprep.subr.bf16.mxu0 0
    %720 = vmatpush1.bf16.msra.mxu0 %v701
    %721 = vmatprep.subr.bf16.mxu0 0
    %722 = vmatpush1.bf16.msra.mxu0 %v702
    %723 = vmatprep.subr.bf16.mxu0 0
    %724 = vmatpush1.bf16.msra.mxu0 %v703
    %725 = vmatprep.subr.bf16.mxu0 0
    %726 = vmatpush1.bf16.msra.mxu0 %v704
    %727 = vmatprep.subr.bf16.mxu0 0
    %728 = vmatpush1.bf16.msra.mxu0 %v705
    %729 = vmatprep.subr.bf16.mxu0 0
    %730 = vmatpush1.bf16.msra.mxu0 0
    %731 = vmatprep.subr.bf16.mxu0 0
    %732 = vmatpush1.bf16.msra.mxu0 0
    %733 = vmatprep.subr.bf16.mxu0 0
    %734 = vmatpush1.bf16.msra.mxu0 0
    %735 = vmatprep.subr.bf16.mxu0 0
    %736 = vmatpush1.bf16.msra.mxu0 0
    %737 = vmatprep.subr.bf16.mxu0 0
    %738 = vmatpush1.bf16.msra.mxu0 0
    %739 = vmatprep.subr.bf16.mxu0 0
    %740 = vmatpush1.bf16.msra.mxu0 0
    %741 = vmatprep.subr.bf16.mxu0 0
    %742 = vmatpush1.bf16.msra.mxu0 0
    %743 = vmatprep.subr.bf16.mxu0 0
    %744 = vmatpush1.bf16.msra.mxu0 0
    %745 = vmatprep.mubr.bf16.mxu0 0
    %746 = vmatmul.mubr.bf16.gmra.mrb[0].mxu0 %v368
    %v747 = vpop.f32.mrb[0].mxu0
    %v748 = vadd.f32 %v711, %v747
    %v749 = vpop.f32.mrb[0].mxu0
    %v750 = vpop.f32.mrb[0].mxu0
    %v751 = vadd.f32 %v711, %v750
    %v752 = vpop.f32.mrb[0].mxu0
    %753 = vmatprep.mubr.bf16.mxu0 0
    %754 = vmatmul.mubr.bf16.gmra.mrb[0].mxu0 %v369
    %v755 = vpop.f32.mrb[0].mxu0
    %v756 = vadd.f32 %v711, %v755
    %v757 = vpop.f32.mrb[0].mxu0
    %v758 = vpop.f32.mrb[0].mxu0
    %v759 = vadd.f32 %v711, %v758
    %v760 = vpop.f32.mrb[0].mxu0
    %761 = vmatprep.mubr.bf16.mxu0 0
    %762 = vmatmul.mubr.bf16.gmra.mrb[0].mxu0 %v370
    %v763 = vpop.f32.mrb[0].mxu0
    %v764 = vadd.f32 %v711, %v763
    %v765 = vpop.f32.mrb[0].mxu0
    %v766 = vpop.f32.mrb[0].mxu0
    %v767 = vadd.f32 %v711, %v766
    %v768 = vpop.f32.mrb[0].mxu0
    %769 = vmatprep.mubr.bf16.mxu0 0
    %770 = vmatmul.mubr.bf16.gmra.mrb[0].mxu0 %v371
    %v771 = vpop.f32.mrb[0].mxu0
    %v772 = vadd.f32 %v711, %v771
    %v773 = vpop.f32.mrb[0].mxu0
    %v774 = vpop.f32.mrb[0].mxu0
    %v775 = vadd.f32 %v711, %v774
    %v776 = vpop.f32.mrb[0].mxu0
    %777 = vmatprep.mubr.bf16.mxu0 0
    %778 = vmatmul.mubr.bf16.gmra.mrb[0].mxu0 %v372
    %v779 = vpop.f32.mrb[0].mxu0
    %v780 = vadd.f32 %v711, %v779
    %v781 = vpop.f32.mrb[0].mxu0
    %v782 = vpop.f32.mrb[0].mxu0
    %v783 = vadd.f32 %v711, %v782
    %v784 = vpop.f32.mrb[0].mxu0
    %785 = vmatprep.mubr.bf16.mxu0 0
    %786 = vmatmul.mubr.bf16.gmra.mrb[0].mxu0 %v373
    %v787 = vpop.f32.mrb[0].mxu0
    %v788 = vadd.f32 %v711, %v787
    %v789 = vpop.f32.mrb[0].mxu0
    %v790 = vpop.f32.mrb[0].mxu0
    %v791 = vadd.f32 %v711, %v790
    %v792 = vpop.f32.mrb[0].mxu0
    %793 = vmatprep.mubr.bf16.mxu0 0
    %794 = vmatmul.mubr.bf16.gmra.mrb[0].mxu0 %v374
    %v795 = vpop.f32.mrb[0].mxu0
    %v796 = vadd.f32 %v711, %v795
    %v797 = vpop.f32.mrb[0].mxu0
    %v798 = vpop.f32.mrb[0].mxu0
    %v799 = vadd.f32 %v711, %v798
    %v800 = vpop.f32.mrb[0].mxu0
    %801 = vmatprep.mubr.bf16.mxu0 0
    %802 = vmatmul.mubr.bf16.gmra.mrb[0].mxu0 %v375
    %v803 = vpop.f32.mrb[0].mxu0
    %v804 = vadd.f32 %v711, %v803
    %v805 = vpop.f32.mrb[0].mxu0
    %v806 = vpop.f32.mrb[0].mxu0
    %v807 = vadd.f32 %v711, %v806
    %v808 = vpop.f32.mrb[0].mxu0
    %809 = vdwg.mxu0
    %v810 = vlaneseq
    %v811 = vand.u32 %v810, 127
    %vm812 = vcmp.lt.s32.totalorder %v811, 8
    %v813 = vsel %vm812, %v748, -1e+30
    %v814 = vsel %vm812, %v751, -1e+30
    %v815 = vsel %vm812, %v756, -1e+30
    %v816 = vsel %vm812, %v759, -1e+30
    %v817 = vsel %vm812, %v764, -1e+30
    %v818 = vsel %vm812, %v767, -1e+30
    %v819 = vsel %vm812, %v772, -1e+30
    %v820 = vsel %vm812, %v775, -1e+30
    %v821 = vsel %vm812, %v780, -1e+30
    %v822 = vsel %vm812, %v783, -1e+30
    %v823 = vsel %vm812, %v788, -1e+30
    %v824 = vsel %vm812, %v791, -1e+30
    %v825 = vsel %vm812, %v796, -1e+30
    %v826 = vsel %vm812, %v799, -1e+30
    %v827 = vsel %vm812, %v804, -1e+30
    %v828 = vsel %vm812, %v807, -1e+30
    %829 = vmax.xlane.f32.xlu0 %v813
    %v830 = vpop.xlane.xlu0 %829
    %831 = vmax.xlane.f32.xlu0 %v814
    %v832 = vpop.xlane.xlu0 %831
    %833 = vmax.xlane.f32.xlu0 %v815
    %v834 = vpop.xlane.xlu0 %833
    %835 = vmax.xlane.f32.xlu0 %v816
    %v836 = vpop.xlane.xlu0 %835
    %837 = vmax.xlane.f32.xlu0 %v817
    %v838 = vpop.xlane.xlu0 %837
    %839 = vmax.xlane.f32.xlu0 %v818
    %v840 = vpop.xlane.xlu0 %839
    %841 = vmax.xlane.f32.xlu0 %v819
    %v842 = vpop.xlane.xlu0 %841
    %843 = vmax.xlane.f32.xlu0 %v820
    %v844 = vpop.xlane.xlu0 %843
    %845 = vmax.xlane.f32.xlu0 %v821
    %v846 = vpop.xlane.xlu0 %845
    %847 = vmax.xlane.f32.xlu0 %v822
    %v848 = vpop.xlane.xlu0 %847
    %849 = vmax.xlane.f32.xlu0 %v823
    %v850 = vpop.xlane.xlu0 %849
    %851 = vmax.xlane.f32.xlu0 %v824
    %v852 = vpop.xlane.xlu0 %851
    %853 = vmax.xlane.f32.xlu0 %v825
    %v854 = vpop.xlane.xlu0 %853
    %855 = vmax.xlane.f32.xlu0 %v826
    %v856 = vpop.xlane.xlu0 %855
    %857 = vmax.xlane.f32.xlu0 %v827
    %v858 = vpop.xlane.xlu0 %857
    %859 = vmax.xlane.f32.xlu0 %v828
    %v860 = vpop.xlane.xlu0 %859
    %v861 = vsub.f32 %v813, %v830
    %v862 = vsub.f32 %v814, %v832
    %v863 = vsub.f32 %v815, %v834
    %v864 = vsub.f32 %v816, %v836
    %v865 = vsub.f32 %v817, %v838
    %v866 = vsub.f32 %v818, %v840
    %v867 = vsub.f32 %v819, %v842
    %v868 = vsub.f32 %v820, %v844
    %v869 = vsub.f32 %v821, %v846
    %v870 = vsub.f32 %v822, %v848
    %v871 = vsub.f32 %v823, %v850
    %v872 = vsub.f32 %v824, %v852
    %v873 = vsub.f32 %v825, %v854
    %v874 = vsub.f32 %v826, %v856
    %v875 = vsub.f32 %v827, %v858
    %v876 = vsub.f32 %v828, %v860
    %v877 = vmul.f32 %v861, 1.442695
    %v878 = vpow.pop %v877
    %v879 = vmul.f32 %v862, 1.442695
    %v880 = vpow.pop %v879
    %v881 = vmul.f32 %v863, 1.442695
    %v882 = vpow.pop %v881
    %v883 = vmul.f32 %v864, 1.442695
    %v884 = vpow.pop %v883
    %v885 = vmul.f32 %v865, 1.442695
    %v886 = vpow.pop %v885
    %v887 = vmul.f32 %v866, 1.442695
    %v888 = vpow.pop %v887
    %v889 = vmul.f32 %v867, 1.442695
    %v890 = vpow.pop %v889
    %v891 = vmul.f32 %v868, 1.442695
    %v892 = vpow.pop %v891
    %v893 = vmul.f32 %v869, 1.442695
    %v894 = vpow.pop %v893
    %v895 = vmul.f32 %v870, 1.442695
    %v896 = vpow.pop %v895
    %v897 = vmul.f32 %v871, 1.442695
    %v898 = vpow.pop %v897
    %v899 = vmul.f32 %v872, 1.442695
    %v900 = vpow.pop %v899
    %v901 = vmul.f32 %v873, 1.442695
    %v902 = vpow.pop %v901
    %v903 = vmul.f32 %v874, 1.442695
    %v904 = vpow.pop %v903
    %v905 = vmul.f32 %v875, 1.442695
    %v906 = vpow.pop %v905
    %v907 = vmul.f32 %v876, 1.442695
    %v908 = vpow.pop %v907
    %909 = vadd.xlane.f32.xlu0 %v878
    %v910 = vpop.xlane.xlu0 %909
    %911 = vadd.xlane.f32.xlu0 %v880
    %v912 = vpop.xlane.xlu0 %911
    %913 = vadd.xlane.f32.xlu0 %v882
    %v914 = vpop.xlane.xlu0 %913
    %915 = vadd.xlane.f32.xlu0 %v884
    %v916 = vpop.xlane.xlu0 %915
    %917 = vadd.xlane.f32.xlu0 %v886
    %v918 = vpop.xlane.xlu0 %917
    %919 = vadd.xlane.f32.xlu0 %v888
    %v920 = vpop.xlane.xlu0 %919
    %921 = vadd.xlane.f32.xlu0 %v890
    %v922 = vpop.xlane.xlu0 %921
    %923 = vadd.xlane.f32.xlu0 %v892
    %v924 = vpop.xlane.xlu0 %923
    %925 = vadd.xlane.f32.xlu0 %v894
    %v926 = vpop.xlane.xlu0 %925
    %927 = vadd.xlane.f32.xlu0 %v896
    %v928 = vpop.xlane.xlu0 %927
    %929 = vadd.xlane.f32.xlu0 %v898
    %v930 = vpop.xlane.xlu0 %929
    %931 = vadd.xlane.f32.xlu0 %v900
    %v932 = vpop.xlane.xlu0 %931
    %933 = vadd.xlane.f32.xlu0 %v902
    %v934 = vpop.xlane.xlu0 %933
    %935 = vadd.xlane.f32.xlu0 %v904
    %v936 = vpop.xlane.xlu0 %935
    %937 = vadd.xlane.f32.xlu0 %v906
    %v938 = vpop.xlane.xlu0 %937
    %939 = vadd.xlane.f32.xlu0 %v908
    %v940 = vpop.xlane.xlu0 %939
    %v941 = vlog2.pop %v910
    %v942 = vmul.f32 %v941, 0.6931472
    %v943 = vlog2.pop %v912
    %v944 = vmul.f32 %v943, 0.6931472
    %v945 = vlog2.pop %v914
    %v946 = vmul.f32 %v945, 0.6931472
    %v947 = vlog2.pop %v916
    %v948 = vmul.f32 %v947, 0.6931472
    %v949 = vlog2.pop %v918
    %v950 = vmul.f32 %v949, 0.6931472
    %v951 = vlog2.pop %v920
    %v952 = vmul.f32 %v951, 0.6931472
    %v953 = vlog2.pop %v922
    %v954 = vmul.f32 %v953, 0.6931472
    %v955 = vlog2.pop %v924
    %v956 = vmul.f32 %v955, 0.6931472
    %v957 = vlog2.pop %v926
    %v958 = vmul.f32 %v957, 0.6931472
    %v959 = vlog2.pop %v928
    %v960 = vmul.f32 %v959, 0.6931472
    %v961 = vlog2.pop %v930
    %v962 = vmul.f32 %v961, 0.6931472
    %v963 = vlog2.pop %v932
    %v964 = vmul.f32 %v963, 0.6931472
    %v965 = vlog2.pop %v934
    %v966 = vmul.f32 %v965, 0.6931472
    %v967 = vlog2.pop %v936
    %v968 = vmul.f32 %v967, 0.6931472
    %v969 = vlog2.pop %v938
    %v970 = vmul.f32 %v969, 0.6931472
    %v971 = vlog2.pop %v940
    %v972 = vmul.f32 %v971, 0.6931472
    %v973 = vsub.f32 %v861, %v942
    %v974 = vsub.f32 %v862, %v944
    %v975 = vsub.f32 %v863, %v946
    %v976 = vsub.f32 %v864, %v948
    %v977 = vsub.f32 %v865, %v950
    %v978 = vsub.f32 %v866, %v952
    %v979 = vsub.f32 %v867, %v954
    %v980 = vsub.f32 %v868, %v956
    %v981 = vsub.f32 %v869, %v958
    %v982 = vsub.f32 %v870, %v960
    %v983 = vsub.f32 %v871, %v962
    %v984 = vsub.f32 %v872, %v964
    %v985 = vsub.f32 %v873, %v966
    %v986 = vsub.f32 %v874, %v968
    %v987 = vsub.f32 %v875, %v970
    %v988 = vsub.f32 %v876, %v972
    %989 = vst [vmem:[#allocation10] sm:$0xff] %v973
    %990 = vst [vmem:[#allocation10 + $0x8] sm:$0xff] %v974
    %991 = vst [vmem:[#allocation10 + $0x10] sm:$0xff] %v975
    %992 = vst [vmem:[#allocation10 + $0x18] sm:$0xff] %v976
    %993 = vst [vmem:[#allocation10 + $0x20] sm:$0xff] %v977
    %994 = vst [vmem:[#allocation10 + $0x28] sm:$0xff] %v978
    %995 = vst [vmem:[#allocation10 + $0x30] sm:$0xff] %v979
    %996 = vst [vmem:[#allocation10 + $0x38] sm:$0xff] %v980
    %997 = vst [vmem:[#allocation10 + $0x40] sm:$0xff] %v981
    %998 = vst [vmem:[#allocation10 + $0x48] sm:$0xff] %v982
    %999 = vst [vmem:[#allocation10 + $0x50] sm:$0xff] %v983
    %1000 = vst [vmem:[#allocation10 + $0x58] sm:$0xff] %v984
    %1001 = vst [vmem:[#allocation10 + $0x60] sm:$0xff] %v985
    %1002 = vst [vmem:[#allocation10 + $0x68] sm:$0xff] %v986
    %1003 = vst [vmem:[#allocation10 + $0x70] sm:$0xff] %v987
    %1004 = vst [vmem:[#allocation10 + $0x78] sm:$0xff] %v988
    // Predicated region
    $region42: #{tpu_custom_call.1} parent=1 // pred_check
      _
    $region43: #{tpu_custom_call.1} parent=1 // pred_check_branch
      %1006 = sbr.rel (0) target = $region45
    $region44: #{tpu_custom_call.1} parent=1 // pred_region
      %s1008 = ssub.s32 2048, 2048
      %1009 = vsyncadd [#allocation4], %s1008
      %s1010 = sshll.u32 [#allocation10], 4
      %s1011 = int_to_ptr.vmem [resolvable:$true] %s1010
      %1016 = dma.vmem_to_hbm [thread:$0]  %s1011, 2048, %s6, [#allocation4], 128, 128, 8
    $region45: #{tpu_custom_call.1} parent=1 // pred_fallthru
      _
    // Predicated region
    $region46: #{tpu_custom_call.1} parent=1 // pred_check
      _
    $region47: #{tpu_custom_call.1} parent=1 // pred_check_branch
      %1018 = sbr.rel (0) target = $region49
    $region48: #{tpu_custom_call.1} parent=1 // pred_region
      %1019 = dma.done [#allocation4], 2048
    $region49: #{tpu_custom_call.1} parent=1 // pred_fallthru
      _
    %1020 = vsyncpa [#allocation3], 1
    %1021 = vsyncpa [#allocation6], 1
    %1022 = vsyncpa [#allocation9], 1
    %1023 = vsyncpa [#allocation4], 1

</llo_original>
